<compile_context>
chip_gen: v7x
topology: tpu7x:2x2x1
jax: 0.10.0
libtpu: 0.0.40
codegen_flags: <defaults>
</compile_context>

<pallas_src>
import jax
import jax.numpy as jnp
from jax.experimental import pallas as pl
from jax.experimental.pallas import tpu as pltpu


# --------------------------------------------------------------------------- #
# Shared fusion head (runs once per batch tile, everything VMEM-resident)
# --------------------------------------------------------------------------- #
def _fusion_head(row_sums, vario, sel, wrt, br, wv1, bv1, wv2, bv2,
                 wrf, brf, wfc3, bfc3, out_ref):
    """row_sums: (ROWS, 1) f32 per-(b, c) pixel sums of the image rows.

    resnet18 stand-in:  sel @ (row_sums * wrt)  ==  pooled @ (beta * wr / HW)
    with sel[b, r] = 1 iff flattened image row r belongs to batch element b,
    avoiding any in-kernel reshape of the flattened row layout.
    """
    f32 = jnp.float32
    resnet_out = jnp.dot(sel, row_sums * wrt, preferred_element_type=f32) + br
    h1 = jnp.maximum(jnp.dot(vario, wv1, preferred_element_type=f32) + bv1, 0.0)
    vario_out = jnp.dot(h1, wv2, preferred_element_type=f32) + bv2
    combined = vario_out + resnet_out                 # alpha/beta pre-folded
    rf = jnp.dot(combined, wrf, preferred_element_type=f32) + brf  # [res | fc1]
    h = jnp.maximum(rf[:, 256:], 0.0) + rf[:, :256]   # relu(fc1(x)) + residual
    out_ref[...] = (jnp.dot(h, wfc3, preferred_element_type=f32)
                    + bfc3).astype(out_ref.dtype)


# --------------------------------------------------------------------------- #
# Kernels
# --------------------------------------------------------------------------- #
def streamed_kernel(img_ref, vario_ref, sel_ref, wrt_ref, br_ref,
                    wv1_ref, bv1_ref, wv2_ref, bv2_ref,
                    wrf_ref, brf_ref, wfc3_ref, bfc3_ref,
                    out_ref, pool_acc):
    """grid = (batch tiles ["parallel"], HW chunks ["arbitrary"]).

    Invariant: the HW axis is the innermost grid axis and out_ref's block index
    does not depend on it, so out_ref stays resident across the HW sweep and
    the single write at the last HW step is what gets written back to HBM.
    """
    hstep = pl.program_id(1)

    @pl.when(hstep == 0)
    def _():
        pool_acc[...] = jnp.zeros_like(pool_acc)

    # Lane-width partial sums: one (ROWS, 128) bf16 tile load + f32 add per
    # lane tile; the cross-lane reduce is deferred to the head below.
    hw_chunk = img_ref.shape[1]
    partial = pool_acc[...]
    for i in range(hw_chunk // 128):
        partial = partial + img_ref[:, i * 128:(i + 1) * 128].astype(jnp.float32)
    pool_acc[...] = partial

    @pl.when(hstep == pl.num_programs(1) - 1)
    def _():
        row_sums = jnp.sum(pool_acc[...], axis=-1, keepdims=True)   # (ROWS, 1)
        _fusion_head(row_sums, vario_ref[...], sel_ref[...], wrt_ref[...],
                     br_ref[...], wv1_ref[...], bv1_ref[...], wv2_ref[...],
                     bv2_ref[...], wrf_ref[...], brf_ref[...], wfc3_ref[...],
                     bfc3_ref[...], out_ref)


def small_kernel(img_ref, vario_ref, sel_ref, wrt_ref, br_ref,
                 wv1_ref, bv1_ref, wv2_ref, bv2_ref,
                 wrf_ref, brf_ref, wfc3_ref, bfc3_ref, out_ref):
    """Tiny-problem path: single gridless invocation, whole arrays in VMEM."""
    row_sums = jnp.sum(img_ref[...].astype(jnp.float32), axis=-1, keepdims=True)
    _fusion_head(row_sums, vario_ref[...], sel_ref[...], wrt_ref[...],
                 br_ref[...], wv1_ref[...], bv1_ref[...], wv2_ref[...],
                 bv2_ref[...], wrf_ref[...], brf_ref[...], wfc3_ref[...],
                 bfc3_ref[...], out_ref)


# --------------------------------------------------------------------------- #
# Host-side parameter preparation (fold alpha/beta/1:HW, pad, fuse weights)
# --------------------------------------------------------------------------- #
def _round_up(x, m):
    return -(-x // m) * m


def _pad2(x, rows, cols):
    return jnp.pad(x, ((0, rows - x.shape[0]), (0, cols - x.shape[1])))


def prepare_head_params(p, *, C, V, hidden, num_classes, tile_b, inv_hw):
    NC_pad = _round_up(num_classes, 128)
    V_pad = _round_up(V, 128)
    H_pad = _round_up(hidden, 128)
    rows = tile_b * C

    # resnet stub fc with beta and 1/HW folded in, tiled to the row layout.
    wr_scaled = (p["beta"] * inv_hw) * p["wr"]                        # (C, NC)
    wrt = jnp.tile(_pad2(wr_scaled, C, NC_pad), (tile_b, 1))          # (rows, NC_pad)
    br = _pad2(p["beta"] * p["br"], 1, NC_pad)

    # Selection matrix: sel[b, r] = 1 iff image row r belongs to batch elem b.
    sel = (jnp.arange(rows)[None, :] // C
           == jnp.arange(tile_b)[:, None]).astype(jnp.float32)        # (tile_b, rows)

    wv1 = _pad2(p["wv1"], V_pad, H_pad)
    bv1 = _pad2(p["bv1"], 1, H_pad)
    wv2 = _pad2(p["alpha"] * p["wv2"], H_pad, NC_pad)
    bv2 = _pad2(p["alpha"] * p["bv2"], 1, NC_pad)

    wrf = jnp.concatenate([_pad2(p["wres"], NC_pad, 256),
                           _pad2(p["wfc1"], NC_pad, 256)], axis=1)    # (NC_pad, 512)
    brf = jnp.concatenate([p["bres"], p["bfc1"]], axis=1)             # (1, 512)
    wfc3 = _pad2(p["wfc3"], 256, NC_pad)
    bfc3 = _pad2(p["bfc3"], 1, NC_pad)

    weights = (sel, wrt, br, wv1, bv1, wv2, bv2, wrf, brf, wfc3, bfc3)
    return weights, NC_pad, V_pad


# --------------------------------------------------------------------------- #
# Wrapper
# --------------------------------------------------------------------------- #
def combined_model_forward(image, vario, params, *, tile_b=None, hw_chunk=None):
    """image: (B, C, H, W) NCHW; vario: (B, V). Returns (B, num_classes)."""
    B, C, H, W = image.shape
    V = vario.shape[1]
    hidden = params["wv1"].shape[1]
    num_classes = params["wfc3"].shape[1]
    HW = H * W
    inv_hw = 1.0 / float(HW)

    # ---- generation-aware limits ---------------------------------------- #
    try:
        vmem_cap = int(pltpu.get_tpu_info().vmem_capacity_bytes)
    except Exception:
        vmem_cap = 64 * 1024 * 1024          # conservative (v7x-sized) fallback
    vmem_limit = int(min(vmem_cap * 3 // 4, 96 * 1024 * 1024))

    # Image goes through HBM/DMA in bf16; all accumulation stays f32.
    img_rows = image.reshape(B * C, HW).astype(jnp.bfloat16)
    hw_pad128 = _round_up(HW, 128)

    # ---- tiny problems: single gridless block, everything in VMEM -------- #
    if tile_b is None and hw_chunk is None and B * C * hw_pad128 * 2 <= 512 * 1024:
        weights, NC_pad, V_pad = prepare_head_params(
            params, C=C, V=V, hidden=hidden, num_classes=num_classes,
            tile_b=B, inv_hw=inv_hw)
        img_p = jnp.pad(img_rows, ((0, 0), (0, hw_pad128 - HW)))
        vario_p = jnp.pad(vario.astype(jnp.float32), ((0, 0), (0, V_pad - V)))
        vspec = pl.BlockSpec(memory_space=pltpu.MemorySpace.VMEM)
        out = pl.pallas_call(
            small_kernel,
            out_shape=jax.ShapeDtypeStruct((B, NC_pad), jnp.float32),
            in_specs=[vspec] * (2 + len(weights)),
            out_specs=vspec,
            compiler_params=pltpu.CompilerParams(vmem_limit_bytes=vmem_limit),
        )(img_p, vario_p, *weights)
        return out[:, :num_classes]

    # ---- streamed grid path --------------------------------------------- #
    # TILE_B: multiple of 8 (sublane-dense vario/out blocks and image rows),
    # big enough for decent MXU-row utilization in the head, small enough that
    # B_pad / TILE_B >= 2 so the "parallel" batch axis shards across both
    # TensorCores on v7x.
    if tile_b is None:
        tile_b_target = 64 if vmem_cap <= 64 * 1024 * 1024 else 32
        tile_b = min(tile_b_target, _round_up(max(1, -(-B // 2)), 8))
    tile_b = max(8, _round_up(int(tile_b), 8))
    rows = tile_b * C
    B_pad = _round_up(B, tile_b)

    # HW chunk: multiple of 128, sized so one bf16 image block is a few MiB
    # (v7x identified by its 64 MiB VMEM: fastest HBM + highest per-step
    # overhead sensitivity -> bigger blocks), capped well below the VMEM limit
    # (3 image buffers + resident weights + scratch).
    if hw_chunk is None:
        target = 4 * 1024 * 1024 if vmem_cap <= 64 * 1024 * 1024 else 2 * 1024 * 1024
        target = min(target, vmem_limit // 8)
        hw_chunk = max(128, (target // (rows * 2) // 128) * 128)
        hw_chunk = min(hw_chunk, hw_pad128)
    hw_chunk = max(128, (int(hw_chunk) // 128) * 128)
    HW_pad = _round_up(HW, hw_chunk)          # zero padding is sum-neutral

    weights, NC_pad, V_pad = prepare_head_params(
        params, C=C, V=V, hidden=hidden, num_classes=num_classes,
        tile_b=tile_b, inv_hw=inv_hw)

    img_p = jnp.pad(img_rows, ((0, (B_pad - B) * C), (0, HW_pad - HW)))
    vario_p = jnp.pad(vario.astype(jnp.float32),
                      ((0, B_pad - B), (0, V_pad - V)))

    grid = (B_pad // tile_b, HW_pad // hw_chunk)

    img_map = lambda b, h: (b, h)
    try:    # deeper buffering hides DMA issue latency behind the tiny per-step add
        img_spec = pl.BlockSpec((rows, hw_chunk), img_map,
                                pipeline_mode=pl.Buffered(3))
    except (TypeError, AttributeError):
        img_spec = pl.BlockSpec((rows, hw_chunk), img_map)

    # TODO(synk): weight specs could use pl.Buffered(1) to drop their unused
    # second pipeline buffer (~0.5 MiB); left at the default to stay conservative.
    in_specs = [img_spec,
                pl.BlockSpec((tile_b, V_pad), lambda b, h: (b, 0))]
    in_specs += [pl.BlockSpec(w.shape, lambda b, h: (0, 0)) for w in weights]
    out_spec = pl.BlockSpec((tile_b, NC_pad), lambda b, h: (b, 0))

    grid_spec = pltpu.PrefetchScalarGridSpec(
        num_scalar_prefetch=0,
        grid=grid,
        in_specs=in_specs,
        out_specs=out_spec,
        scratch_shapes=[pltpu.VMEM((rows, 128), jnp.float32)],
    )

    out_padded = pl.pallas_call(
        streamed_kernel,
        out_shape=jax.ShapeDtypeStruct((B_pad, NC_pad), jnp.float32),
        grid_spec=grid_spec,
        compiler_params=pltpu.CompilerParams(
            dimension_semantics=("parallel", "arbitrary"),
            vmem_limit_bytes=vmem_limit),
    )(img_p, vario_p, *weights)

    return out_padded[:B, :num_classes]


# --------------------------------------------------------------------------- #
# Parameter init (PyTorch-Linear-style, weights stored as (in, out))
# --------------------------------------------------------------------------- #
def init_params(key, *, C, V, hidden, num_classes, a=0.5, b=0.5):
    def linear(k, fan_in, fan_out):
        kw, kb = jax.random.split(k)
        bound = 1.0 / jnp.sqrt(jnp.float32(fan_in))
        w = jax.random.uniform(kw, (fan_in, fan_out), jnp.float32, -bound, bound)
        bias = jax.random.uniform(kb, (1, fan_out), jnp.float32, -bound, bound)
        return w, bias

    ks = jax.random.split(key, 6)
    wr, br = linear(ks[0], C, num_classes)          # resnet stub fc
    wv1, bv1 = linear(ks[1], V, hidden)             # vario_mlp fc1
    wv2, bv2 = linear(ks[2], hidden, num_classes)   # vario_mlp fc2
    wres, bres = linear(ks[3], num_classes, 256)    # residual_fc1
    wfc1, bfc1 = linear(ks[4], num_classes, 256)    # fc1
    wfc3, bfc3 = linear(ks[5], 256, num_classes)    # fc3
    return dict(
        alpha=jnp.float32(a), beta=jnp.float32(b),
        wr=wr, br=br, wv1=wv1, bv1=bv1, wv2=wv2, bv2=bv2,
        wres=wres, bres=bres, wfc1=wfc1, bfc1=bfc1, wfc3=wfc3, bfc3=bfc3,
    )


def reference_forward(image, vario, p):
    """Pure-JAX reference mirroring the PyTorch forward semantics."""
    pooled = jnp.mean(image.reshape(image.shape[0], image.shape[1], -1), axis=-1)
    resnet_out = pooled @ p["wr"] + p["br"]
    h1 = jnp.maximum(vario @ p["wv1"] + p["bv1"], 0.0)
    vario_out = h1 @ p["wv2"] + p["bv2"]
    combined = p["alpha"] * vario_out + p["beta"] * resnet_out
    residual = combined @ p["wres"] + p["bres"]
    h = jnp.maximum(combined @ p["wfc1"] + p["bfc1"], 0.0) + residual
    return h @ p["wfc3"] + p["bfc3"]


if __name__ == "__main__":
    key = jax.random.PRNGKey(0)
    kv = jax.random.split(key, 5)

    V, HIDDEN, NUM_CLASSES = 8, 32, 10
    C = 4
    params = init_params(kv[0], C=C, V=V, hidden=HIDDEN, num_classes=NUM_CLASSES)

    # ---- test 1: spec shapes (tiny -> single gridless block path) ---------
    B, H, W = 2, 16, 16
    image = jax.random.normal(kv[1], (B, C, H, W), jnp.float32)
    vario = jax.random.normal(kv[2], (B, V), jnp.float32)
    out = jax.block_until_ready(combined_model_forward(image, vario, params))
    ref = reference_forward(image.astype(jnp.bfloat16).astype(jnp.float32),
                            vario, params)
    assert out.shape == (B, NUM_CLASSES)
    assert jnp.allclose(out, ref, atol=1e-2, rtol=1e-2), "small-path mismatch"

    # ---- test 2: streamed grid path (multi HW chunk + multi batch tile) ---
    B2, H2, W2 = 24, 64, 64
    image2 = jax.random.normal(kv[3], (B2, C, H2, W2), jnp.float32)
    vario2 = jax.random.normal(kv[4], (B2, V), jnp.float32)
    out2 = jax.block_until_ready(
        combined_model_forward(image2, vario2, params, tile_b=8, hw_chunk=1024))
    ref2 = reference_forward(image2.astype(jnp.bfloat16).astype(jnp.float32),
                             vario2, params)
    assert out2.shape == (B2, NUM_CLASSES)
    assert jnp.allclose(out2, ref2, atol=1e-2, rtol=1e-2), "streamed-path mismatch"

    print("KERNEL_OK")
</pallas_src>

<mosaic_0001>
module attributes {stable_mosaic.version = 11 : i64} {
  func.func @small_kernel(%arg0: memref<8x256xbf16, #tpu.memory_space<vmem>>, %arg1: memref<2x128xf32, #tpu.memory_space<vmem>>, %arg2: memref<2x8xf32, #tpu.memory_space<vmem>>, %arg3: memref<8x128xf32, #tpu.memory_space<vmem>>, %arg4: memref<1x128xf32, #tpu.memory_space<vmem>>, %arg5: memref<128x128xf32, #tpu.memory_space<vmem>>, %arg6: memref<1x128xf32, #tpu.memory_space<vmem>>, %arg7: memref<128x128xf32, #tpu.memory_space<vmem>>, %arg8: memref<1x128xf32, #tpu.memory_space<vmem>>, %arg9: memref<128x512xf32, #tpu.memory_space<vmem>>, %arg10: memref<1x512xf32, #tpu.memory_space<vmem>>, %arg11: memref<256x128xf32, #tpu.memory_space<vmem>>, %arg12: memref<1x128xf32, #tpu.memory_space<vmem>>, %arg13: memref<2x128xf32, #tpu.memory_space<vmem>>) attributes {dimension_semantics = [], scalar_prefetch = 0 : i64, scratch_operands = 0 : i64, tpu.core_type = #tpu.core_type<tc>} {
    %c0 = arith.constant 0 : index
    %c0_0 = arith.constant 0 : index
    %0 = vector.load %arg0[%c0, %c0_0] : memref<8x256xbf16, #tpu.memory_space<vmem>>, vector<8x256xbf16>
    %1 = arith.extf %0 : vector<8x256xbf16> to vector<8x256xf32>
    %cst = arith.constant dense<0.000000e+00> : vector<8xf32>
    %2 = vector.multi_reduction <add>, %1, %cst [1] : vector<8x256xf32> to vector<8xf32>
    %3 = vector.shape_cast %2 : vector<8xf32> to vector<8x1xf32>
    %c0_1 = arith.constant 0 : index
    %c0_2 = arith.constant 0 : index
    %4 = vector.load %arg1[%c0_1, %c0_2] : memref<2x128xf32, #tpu.memory_space<vmem>>, vector<2x128xf32>
    %c0_3 = arith.constant 0 : index
    %c0_4 = arith.constant 0 : index
    %5 = vector.load %arg2[%c0_3, %c0_4] : memref<2x8xf32, #tpu.memory_space<vmem>>, vector<2x8xf32>
    %c0_5 = arith.constant 0 : index
    %c0_6 = arith.constant 0 : index
    %6 = vector.load %arg3[%c0_5, %c0_6] : memref<8x128xf32, #tpu.memory_space<vmem>>, vector<8x128xf32>
    %c0_7 = arith.constant 0 : index
    %c0_8 = arith.constant 0 : index
    %7 = vector.load %arg4[%c0_7, %c0_8] : memref<1x128xf32, #tpu.memory_space<vmem>>, vector<1x128xf32>
    %c0_9 = arith.constant 0 : index
    %c0_10 = arith.constant 0 : index
    %8 = vector.load %arg5[%c0_9, %c0_10] : memref<128x128xf32, #tpu.memory_space<vmem>>, vector<128x128xf32>
    %c0_11 = arith.constant 0 : index
    %c0_12 = arith.constant 0 : index
    %9 = vector.load %arg6[%c0_11, %c0_12] : memref<1x128xf32, #tpu.memory_space<vmem>>, vector<1x128xf32>
    %c0_13 = arith.constant 0 : index
    %c0_14 = arith.constant 0 : index
    %10 = vector.load %arg7[%c0_13, %c0_14] : memref<128x128xf32, #tpu.memory_space<vmem>>, vector<128x128xf32>
    %c0_15 = arith.constant 0 : index
    %c0_16 = arith.constant 0 : index
    %11 = vector.load %arg8[%c0_15, %c0_16] : memref<1x128xf32, #tpu.memory_space<vmem>>, vector<1x128xf32>
    %c0_17 = arith.constant 0 : index
    %c0_18 = arith.constant 0 : index
    %12 = vector.load %arg9[%c0_17, %c0_18] : memref<128x512xf32, #tpu.memory_space<vmem>>, vector<128x512xf32>
    %c0_19 = arith.constant 0 : index
    %c0_20 = arith.constant 0 : index
    %13 = vector.load %arg10[%c0_19, %c0_20] : memref<1x512xf32, #tpu.memory_space<vmem>>, vector<1x512xf32>
    %c0_21 = arith.constant 0 : index
    %c0_22 = arith.constant 0 : index
    %14 = vector.load %arg11[%c0_21, %c0_22] : memref<256x128xf32, #tpu.memory_space<vmem>>, vector<256x128xf32>
    %c0_23 = arith.constant 0 : index
    %c0_24 = arith.constant 0 : index
    %15 = vector.load %arg12[%c0_23, %c0_24] : memref<1x128xf32, #tpu.memory_space<vmem>>, vector<1x128xf32>
    %16 = vector.broadcast %3 : vector<8x1xf32> to vector<8x128xf32>
    %17 = arith.mulf %16, %6 : vector<8x128xf32>
    %cst_25 = arith.constant dense<0.000000e+00> : vector<2x128xf32>
    %18 = tpu.matmul %5, %17, %cst_25 {dimension_numbers = #tpu.dot_dimension_numbers<[1], [0], [0], [1], [0, 0, 1, 1], [], []>} : vector<2x8xf32>, vector<8x128xf32>, vector<2x128xf32> -> vector<2x128xf32>
    %19 = vector.broadcast %7 : vector<1x128xf32> to vector<2x128xf32>
    %20 = arith.addf %18, %19 : vector<2x128xf32>
    %cst_26 = arith.constant dense<0.000000e+00> : vector<2x128xf32>
    %21 = tpu.matmul %4, %8, %cst_26 {dimension_numbers = #tpu.dot_dimension_numbers<[1], [0], [0], [1], [0, 0, 1, 1], [], []>} : vector<2x128xf32>, vector<128x128xf32>, vector<2x128xf32> -> vector<2x128xf32>
    %22 = vector.broadcast %9 : vector<1x128xf32> to vector<2x128xf32>
    %23 = arith.addf %21, %22 : vector<2x128xf32>
    %cst_27 = arith.constant 0.000000e+00 : f32
    %24 = vector.broadcast %cst_27 : f32 to vector<2x128xf32>
    %25 = arith.maximumf %23, %24 : vector<2x128xf32>
    %cst_28 = arith.constant dense<0.000000e+00> : vector<2x128xf32>
    %26 = tpu.matmul %25, %10, %cst_28 {dimension_numbers = #tpu.dot_dimension_numbers<[1], [0], [0], [1], [0, 0, 1, 1], [], []>} : vector<2x128xf32>, vector<128x128xf32>, vector<2x128xf32> -> vector<2x128xf32>
    %27 = vector.broadcast %11 : vector<1x128xf32> to vector<2x128xf32>
    %28 = arith.addf %26, %27 : vector<2x128xf32>
    %29 = arith.addf %28, %20 : vector<2x128xf32>
    %cst_29 = arith.constant dense<0.000000e+00> : vector<2x512xf32>
    %30 = tpu.matmul %29, %12, %cst_29 {dimension_numbers = #tpu.dot_dimension_numbers<[1], [0], [0], [1], [0, 0, 1, 1], [], []>} : vector<2x128xf32>, vector<128x512xf32>, vector<2x512xf32> -> vector<2x512xf32>
    %31 = vector.broadcast %13 : vector<1x512xf32> to vector<2x512xf32>
    %32 = arith.addf %30, %31 : vector<2x512xf32>
    %33 = vector.extract_strided_slice %32 {offsets = [0, 256], sizes = [2, 256], strides = [1, 1]} : vector<2x512xf32> to vector<2x256xf32>
    %cst_30 = arith.constant 0.000000e+00 : f32
    %34 = vector.broadcast %cst_30 : f32 to vector<2x256xf32>
    %35 = arith.maximumf %33, %34 : vector<2x256xf32>
    %36 = vector.extract_strided_slice %32 {offsets = [0, 0], sizes = [2, 256], strides = [1, 1]} : vector<2x512xf32> to vector<2x256xf32>
    %37 = arith.addf %35, %36 : vector<2x256xf32>
    %cst_31 = arith.constant dense<0.000000e+00> : vector<2x128xf32>
    %38 = tpu.matmul %37, %14, %cst_31 {dimension_numbers = #tpu.dot_dimension_numbers<[1], [0], [0], [1], [0, 0, 1, 1], [], []>} : vector<2x256xf32>, vector<256x128xf32>, vector<2x128xf32> -> vector<2x128xf32>
    %39 = vector.broadcast %15 : vector<1x128xf32> to vector<2x128xf32>
    %40 = arith.addf %38, %39 : vector<2x128xf32>
    %c0_32 = arith.constant 0 : index
    %c0_33 = arith.constant 0 : index
    %41 = vector.load %arg13[%c0_32, %c0_33] : memref<2x128xf32, #tpu.memory_space<vmem>>, vector<2x128xf32>
    tpu.vector_store %arg13[%c0_32, %c0_33], %40 {strides = array<i32>} : memref<2x128xf32, #tpu.memory_space<vmem>>, vector<2x128xf32>,
    return
  }
}

</mosaic_0001>

<llo_original>
// kernel: tpu_custom_call.1
$region0: #{tpu_custom_call.1}
  #allocation0 [shape = 'u32[]', space=smem, size = 0x4, offset = 0x4, fixed_abs, tag = 'smem constant byte address 0x4 - core index']
  #allocation1 [shape = 'u32[144,128]{1,0:T(1,128)}', space=vmem, size = 0x12000, scoped, tag = 'internal scratch']
  %s0 = inlined_call_operand.hbm [shape: bf16[8,256], index: 0, kind: input, shape index: {}]
  %s1 = inlined_call_operand.vmem [shape: f32[2,128], index: 1, kind: input, shape index: {}]
  %s2 = inlined_call_operand.hbm [shape: f32[2,8], index: 2, kind: input, shape index: {}]
  %s3 = inlined_call_operand.vmem [shape: f32[8,128], index: 3, kind: input, shape index: {}]
  %s4 = inlined_call_operand.vmem [shape: f32[1,128], index: 4, kind: input, shape index: {}]
  %s5 = inlined_call_operand.hbm [shape: f32[128,128], index: 5, kind: input, shape index: {}]
  %s6 = inlined_call_operand.vmem [shape: f32[1,128], index: 6, kind: input, shape index: {}]
  %s7 = inlined_call_operand.hbm [shape: f32[128,128], index: 7, kind: input, shape index: {}]
  %s8 = inlined_call_operand.vmem [shape: f32[1,128], index: 8, kind: input, shape index: {}]
  %s9 = inlined_call_operand.hbm [shape: f32[128,512], index: 9, kind: input, shape index: {}]
  %s10 = inlined_call_operand.vmem [shape: f32[1,512], index: 10, kind: input, shape index: {}]
  %s11 = inlined_call_operand.hbm [shape: f32[256,128], index: 11, kind: input, shape index: {}]
  %s12 = inlined_call_operand.vmem [shape: f32[1,128], index: 12, kind: input, shape index: {}]
  %s13 = inlined_call_operand.hbm [shape: f32[2,128], index: 13, kind: output, shape index: {}]
  %s14 = sld [smem:[#allocation0]]
  $region86: #{tpu_custom_call.1} parent=0
    _
  %s16 = ssub.s32 1, %s14
  %s17 = scalar_select 0, %s16, %s14
  $region1: #{tpu_custom_call.1} parent=0
    #allocation2 [shape = 'u8[4096]{0}', space=vmem, size = 0x1000, scoped, tag = 'input window, operand 0, single buffered']
    #allocation3 [shape = 's32[1]{0}', space=sflag, size = 0x4, scoped, tag = 'scoped memory for tpu_custom_call.1']
    #allocation4 [shape = 's32[1]{0}', space=sflag, size = 0x4, scoped, tag = 'scoped memory for tpu_custom_call.1']
    #allocation5 [shape = 'u8[1024]{0}', space=vmem, size = 0x400, scoped, tag = 'input window, operand 2, single buffered']
    #allocation6 [shape = 's32[1]{0}', space=sflag, size = 0x4, scoped, tag = 'scoped memory for tpu_custom_call.1']
    #allocation7 [shape = 'u8[65536]{0}', space=vmem, size = 0x10000, scoped, tag = 'input window, operand 5, single buffered']
    #allocation8 [shape = 'u8[65536]{0}', space=vmem, size = 0x10000, scoped, tag = 'input window, operand 7, single buffered']
    #allocation9 [shape = 's32[1]{0}', space=sflag, size = 0x4, scoped, tag = 'scoped memory for tpu_custom_call.1']
    #allocation10 [shape = 'u8[262144]{0}', space=vmem, size = 0x40000, scoped, tag = 'input window, operand 9, single buffered']
    #allocation11 [shape = 'u8[131072]{0}', space=vmem, size = 0x20000, scoped, tag = 'input window, operand 11, single buffered']
    #allocation12 [shape = 's32[1]{0}', space=sflag, size = 0x4, scoped, tag = 'scoped memory for tpu_custom_call.1']
    #allocation13 [shape = 'u8[1024]{0}', space=vmem, size = 0x400, scoped, tag = 'output window, operand 0, single buffered']
    %18 = vsyncpa [#allocation3], 0
    %19 = vsyncpa [#allocation6], 0
    %20 = vsyncpa [#allocation9], 0
    %21 = vsyncpa [#allocation12], 0
    %22 = vsyncpa [#allocation4], 0
    // Predicated region
    $region2: #{tpu_custom_call.1} parent=1 // pred_check
      _
    $region3: #{tpu_custom_call.1} parent=1 // pred_check_branch
      %24 = sbr.rel (0) target = $region5
    $region4: #{tpu_custom_call.1} parent=1 // pred_region
      %s26 = ssub.s32 128, 128
      %27 = vsyncadd [#allocation3], %s26
      %s29 = sshll.u32 [#allocation2], 4
      %s30 = int_to_ptr.vmem [resolvable:$true] %s29
      %32 = dma.hbm_to_vmem [thread:$0]  %s0, 128, %s30, [#allocation3]
    $region5: #{tpu_custom_call.1} parent=1 // pred_fallthru
      _
    // Predicated region
    $region6: #{tpu_custom_call.1} parent=1 // pred_check
      _
    $region7: #{tpu_custom_call.1} parent=1 // pred_check_branch
      %34 = sbr.rel (0) target = $region9
    $region8: #{tpu_custom_call.1} parent=1 // pred_region
      _
    $region9: #{tpu_custom_call.1} parent=1 // pred_fallthru
      _
    // Predicated region
    $region10: #{tpu_custom_call.1} parent=1 // pred_check
      _
    $region11: #{tpu_custom_call.1} parent=1 // pred_check_branch
      %36 = sbr.rel (0) target = $region13
    $region12: #{tpu_custom_call.1} parent=1 // pred_region
      %s38 = ssub.s32 32, 32
      %39 = vsyncadd [#allocation6], %s38
      %s41 = sshll.u32 [#allocation5], 4
      %s42 = int_to_ptr.vmem [resolvable:$true] %s41
      %44 = dma.hbm_to_vmem [thread:$0]  %s2, 32, %s42, [#allocation6]
    $region13: #{tpu_custom_call.1} parent=1 // pred_fallthru
      _
    // Predicated region
    $region14: #{tpu_custom_call.1} parent=1 // pred_check
      _
    $region15: #{tpu_custom_call.1} parent=1 // pred_check_branch
      %46 = sbr.rel (0) target = $region17
    $region16: #{tpu_custom_call.1} parent=1 // pred_region
      _
    $region17: #{tpu_custom_call.1} parent=1 // pred_fallthru
      _
    // Predicated region
    $region18: #{tpu_custom_call.1} parent=1 // pred_check
      _
    $region19: #{tpu_custom_call.1} parent=1 // pred_check_branch
      %48 = sbr.rel (0) target = $region21
    $region20: #{tpu_custom_call.1} parent=1 // pred_region
      _
    $region21: #{tpu_custom_call.1} parent=1 // pred_fallthru
      _
    // Predicated region
    $region22: #{tpu_custom_call.1} parent=1 // pred_check
      _
    $region23: #{tpu_custom_call.1} parent=1 // pred_check_branch
      %50 = sbr.rel (0) target = $region25
    $region24: #{tpu_custom_call.1} parent=1 // pred_region
      %s52 = ssub.s32 2048, 2048
      %53 = vsyncadd [#allocation6], %s52
      %s54 = sshll.u32 [#allocation7], 4
      %s55 = int_to_ptr.vmem [resolvable:$true] %s54
      %60 = dma.hbm_to_vmem [thread:$0]  %s5, 2048, %s55, [#allocation6], 128, 128, 8
    $region25: #{tpu_custom_call.1} parent=1 // pred_fallthru
      _
    // Predicated region
    $region26: #{tpu_custom_call.1} parent=1 // pred_check
      _
    $region27: #{tpu_custom_call.1} parent=1 // pred_check_branch
      %62 = sbr.rel (0) target = $region29
    $region28: #{tpu_custom_call.1} parent=1 // pred_region
      _
    $region29: #{tpu_custom_call.1} parent=1 // pred_fallthru
      _
    // Predicated region
    $region30: #{tpu_custom_call.1} parent=1 // pred_check
      _
    $region31: #{tpu_custom_call.1} parent=1 // pred_check_branch
      %64 = sbr.rel (0) target = $region33
    $region32: #{tpu_custom_call.1} parent=1 // pred_region
      %s66 = ssub.s32 2048, 2048
      %67 = vsyncadd [#allocation9], %s66
      %s68 = sshll.u32 [#allocation8], 4
      %s69 = int_to_ptr.vmem [resolvable:$true] %s68
      %74 = dma.hbm_to_vmem [thread:$0]  %s7, 2048, %s69, [#allocation9], 128, 128, 8
    $region33: #{tpu_custom_call.1} parent=1 // pred_fallthru
      _
    // Predicated region
    $region34: #{tpu_custom_call.1} parent=1 // pred_check
      _
    $region35: #{tpu_custom_call.1} parent=1 // pred_check_branch
      %76 = sbr.rel (0) target = $region37
    $region36: #{tpu_custom_call.1} parent=1 // pred_region
      _
    $region37: #{tpu_custom_call.1} parent=1 // pred_fallthru
      _
    // Predicated region
    $region38: #{tpu_custom_call.1} parent=1 // pred_check
      _
    $region39: #{tpu_custom_call.1} parent=1 // pred_check_branch
      %78 = sbr.rel (0) target = $region41
    $region40: #{tpu_custom_call.1} parent=1 // pred_region
      %s80 = ssub.s32 8192, 8192
      %81 = vsyncadd [#allocation9], %s80
      %s82 = sshll.u32 [#allocation10], 4
      %s83 = int_to_ptr.vmem [resolvable:$true] %s82
      %88 = dma.hbm_to_vmem [thread:$0]  %s9, 8192, %s83, [#allocation9], 512, 512, 32
    $region41: #{tpu_custom_call.1} parent=1 // pred_fallthru
      _
    // Predicated region
    $region42: #{tpu_custom_call.1} parent=1 // pred_check
      _
    $region43: #{tpu_custom_call.1} parent=1 // pred_check_branch
      %90 = sbr.rel (0) target = $region45
    $region44: #{tpu_custom_call.1} parent=1 // pred_region
      _
    $region45: #{tpu_custom_call.1} parent=1 // pred_fallthru
      _
    // Predicated region
    $region46: #{tpu_custom_call.1} parent=1 // pred_check
      _
    $region47: #{tpu_custom_call.1} parent=1 // pred_check_branch
      %92 = sbr.rel (0) target = $region49
    $region48: #{tpu_custom_call.1} parent=1 // pred_region
      %s94 = ssub.s32 4096, 4096
      %95 = vsyncadd [#allocation12], %s94
      %s96 = sshll.u32 [#allocation11], 4
      %s97 = int_to_ptr.vmem [resolvable:$true] %s96
      %102 = dma.hbm_to_vmem [thread:$0]  %s11, 4096, %s97, [#allocation12], 128, 128, 8
    $region49: #{tpu_custom_call.1} parent=1 // pred_fallthru
      _
    // Predicated region
    $region50: #{tpu_custom_call.1} parent=1 // pred_check
      _
    $region51: #{tpu_custom_call.1} parent=1 // pred_check_branch
      %104 = sbr.rel (0) target = $region53
    $region52: #{tpu_custom_call.1} parent=1 // pred_region
      _
    $region53: #{tpu_custom_call.1} parent=1 // pred_fallthru
      _
    // Predicated region
    $region54: #{tpu_custom_call.1} parent=1 // pred_check
      _
    $region55: #{tpu_custom_call.1} parent=1 // pred_check_branch
      %106 = sbr.rel (0) target = $region57
    $region56: #{tpu_custom_call.1} parent=1 // pred_region
      %107 = dma.done [#allocation3], 128
    $region57: #{tpu_custom_call.1} parent=1 // pred_fallthru
      _
    // Predicated region
    $region58: #{tpu_custom_call.1} parent=1 // pred_check
      _
    $region59: #{tpu_custom_call.1} parent=1 // pred_check_branch
      %109 = sbr.rel (0) target = $region61
    $region60: #{tpu_custom_call.1} parent=1 // pred_region
      %110 = dma.done [#allocation6], 32
    $region61: #{tpu_custom_call.1} parent=1 // pred_fallthru
      _
    // Predicated region
    $region62: #{tpu_custom_call.1} parent=1 // pred_check
      _
    $region63: #{tpu_custom_call.1} parent=1 // pred_check_branch
      %112 = sbr.rel (0) target = $region65
    $region64: #{tpu_custom_call.1} parent=1 // pred_region
      %113 = dma.done [#allocation6], 2048
    $region65: #{tpu_custom_call.1} parent=1 // pred_fallthru
      _
    // Predicated region
    $region66: #{tpu_custom_call.1} parent=1 // pred_check
      _
    $region67: #{tpu_custom_call.1} parent=1 // pred_check_branch
      %115 = sbr.rel (0) target = $region69
    $region68: #{tpu_custom_call.1} parent=1 // pred_region
      %116 = dma.done [#allocation9], 2048
    $region69: #{tpu_custom_call.1} parent=1 // pred_fallthru
      _
    // Predicated region
    $region70: #{tpu_custom_call.1} parent=1 // pred_check
      _
    $region71: #{tpu_custom_call.1} parent=1 // pred_check_branch
      %118 = sbr.rel (0) target = $region73
    $region72: #{tpu_custom_call.1} parent=1 // pred_region
      %119 = dma.done [#allocation9], 8192
    $region73: #{tpu_custom_call.1} parent=1 // pred_fallthru
      _
    // Predicated region
    $region74: #{tpu_custom_call.1} parent=1 // pred_check
      _
    $region75: #{tpu_custom_call.1} parent=1 // pred_check_branch
      %121 = sbr.rel (0) target = $region77
    $region76: #{tpu_custom_call.1} parent=1 // pred_region
      %122 = dma.done [#allocation12], 4096
    $region77: #{tpu_custom_call.1} parent=1 // pred_fallthru
      _
    %v123 = vld [vmem:[#allocation2] sm:$0xff]
    %v124 = vunpack.c.l.bf16 %v123
    %v125 = vunpack.c.h.bf16 %v123
    %v126 = vadd.f32 %v124, %v125
    %127 = vadd.xlane.f32.xlu0 %v126
    %v128 = vpop.xlane.xlu0 %127
    %v129 = vld [vmem:[%s1] sm:$0x3]
    %v130 = vld [vmem:[#allocation5] sm:$0x3]
    %v131 = vld [vmem:[%s3] sm:$0xff]
    %v132 = vld [vmem:[%s4] sm:$0x1]
    %v133 = vld [vmem:[#allocation7] sm:$0xff]
    %v134 = vld [vmem:[#allocation7 + $0x8] sm:$0xff]
    %v135 = vld [vmem:[#allocation7 + $0x10] sm:$0xff]
    %v136 = vld [vmem:[#allocation7 + $0x18] sm:$0xff]
    %v137 = vld [vmem:[#allocation7 + $0x20] sm:$0xff]
    %v138 = vld [vmem:[#allocation7 + $0x28] sm:$0xff]
    %v139 = vld [vmem:[#allocation7 + $0x30] sm:$0xff]
    %v140 = vld [vmem:[#allocation7 + $0x38] sm:$0xff]
    %v141 = vld [vmem:[#allocation7 + $0x40] sm:$0xff]
    %v142 = vld [vmem:[#allocation7 + $0x48] sm:$0xff]
    %v143 = vld [vmem:[#allocation7 + $0x50] sm:$0xff]
    %v144 = vld [vmem:[#allocation7 + $0x58] sm:$0xff]
    %v145 = vld [vmem:[#allocation7 + $0x60] sm:$0xff]
    %v146 = vld [vmem:[#allocation7 + $0x68] sm:$0xff]
    %v147 = vld [vmem:[#allocation7 + $0x70] sm:$0xff]
    %v148 = vld [vmem:[#allocation7 + $0x78] sm:$0xff]
    %v149 = vld [vmem:[%s6] sm:$0x1]
    %v150 = vld [vmem:[#allocation8] sm:$0xff]
    %v151 = vld [vmem:[#allocation8 + $0x8] sm:$0xff]
    %v152 = vld [vmem:[#allocation8 + $0x10] sm:$0xff]
    %v153 = vld [vmem:[#allocation8 + $0x18] sm:$0xff]
    %v154 = vld [vmem:[#allocation8 + $0x20] sm:$0xff]
    %v155 = vld [vmem:[#allocation8 + $0x28] sm:$0xff]
    %v156 = vld [vmem:[#allocation8 + $0x30] sm:$0xff]
    %v157 = vld [vmem:[#allocation8 + $0x38] sm:$0xff]
    %v158 = vld [vmem:[#allocation8 + $0x40] sm:$0xff]
    %v159 = vld [vmem:[#allocation8 + $0x48] sm:$0xff]
    %v160 = vld [vmem:[#allocation8 + $0x50] sm:$0xff]
    %v161 = vld [vmem:[#allocation8 + $0x58] sm:$0xff]
    %v162 = vld [vmem:[#allocation8 + $0x60] sm:$0xff]
    %v163 = vld [vmem:[#allocation8 + $0x68] sm:$0xff]
    %v164 = vld [vmem:[#allocation8 + $0x70] sm:$0xff]
    %v165 = vld [vmem:[#allocation8 + $0x78] sm:$0xff]
    %v166 = vld [vmem:[%s8] sm:$0x1]
    %v167 = vld [vmem:[#allocation10] sm:$0xff]
    %v168 = vld [vmem:[#allocation10 + $0x8] sm:$0xff]
    %v169 = vld [vmem:[#allocation10 + $0x10] sm:$0xff]
    %v170 = vld [vmem:[#allocation10 + $0x18] sm:$0xff]
    %v171 = vld [vmem:[#allocation10 + $0x20] sm:$0xff]
    %v172 = vld [vmem:[#allocation10 + $0x28] sm:$0xff]
    %v173 = vld [vmem:[#allocation10 + $0x30] sm:$0xff]
    %v174 = vld [vmem:[#allocation10 + $0x38] sm:$0xff]
    %v175 = vld [vmem:[#allocation10 + $0x40] sm:$0xff]
    %v176 = vld [vmem:[#allocation10 + $0x48] sm:$0xff]
    %v177 = vld [vmem:[#allocation10 + $0x50] sm:$0xff]
    %v178 = vld [vmem:[#allocation10 + $0x58] sm:$0xff]
    %v179 = vld [vmem:[#allocation10 + $0x60] sm:$0xff]
    %v180 = vld [vmem:[#allocation10 + $0x68] sm:$0xff]
    %v181 = vld [vmem:[#allocation10 + $0x70] sm:$0xff]
    %v182 = vld [vmem:[#allocation10 + $0x78] sm:$0xff]
    %v183 = vld [vmem:[#allocation10 + $0x80] sm:$0xff]
    %v184 = vld [vmem:[#allocation10 + $0x88] sm:$0xff]
    %v185 = vld [vmem:[#allocation10 + $0x90] sm:$0xff]
    %v186 = vld [vmem:[#allocation10 + $0x98] sm:$0xff]
    %v187 = vld [vmem:[#allocation10 + $0xa0] sm:$0xff]
    %v188 = vld [vmem:[#allocation10 + $0xa8] sm:$0xff]
    %v189 = vld [vmem:[#allocation10 + $0xb0] sm:$0xff]
    %v190 = vld [vmem:[#allocation10 + $0xb8] sm:$0xff]
    %v191 = vld [vmem:[#allocation10 + $0xc0] sm:$0xff]
    %v192 = vld [vmem:[#allocation10 + $0xc8] sm:$0xff]
    %v193 = vld [vmem:[#allocation10 + $0xd0] sm:$0xff]
    %v194 = vld [vmem:[#allocation10 + $0xd8] sm:$0xff]
    %v195 = vld [vmem:[#allocation10 + $0xe0] sm:$0xff]
    %v196 = vld [vmem:[#allocation10 + $0xe8] sm:$0xff]
    %v197 = vld [vmem:[#allocation10 + $0xf0] sm:$0xff]
    %v198 = vld [vmem:[#allocation10 + $0xf8] sm:$0xff]
    %v199 = vld [vmem:[#allocation10 + $0x100] sm:$0xff]
    %v200 = vld [vmem:[#allocation10 + $0x108] sm:$0xff]
    %v201 = vld [vmem:[#allocation10 + $0x110] sm:$0xff]
    %v202 = vld [vmem:[#allocation10 + $0x118] sm:$0xff]
    %v203 = vld [vmem:[#allocation10 + $0x120] sm:$0xff]
    %v204 = vld [vmem:[#allocation10 + $0x128] sm:$0xff]
    %v205 = vld [vmem:[#allocation10 + $0x130] sm:$0xff]
    %v206 = vld [vmem:[#allocation10 + $0x138] sm:$0xff]
    %v207 = vld [vmem:[#allocation10 + $0x140] sm:$0xff]
    %v208 = vld [vmem:[#allocation10 + $0x148] sm:$0xff]
    %v209 = vld [vmem:[#allocation10 + $0x150] sm:$0xff]
    %v210 = vld [vmem:[#allocation10 + $0x158] sm:$0xff]
    %v211 = vld [vmem:[#allocation10 + $0x160] sm:$0xff]
    %v212 = vld [vmem:[#allocation10 + $0x168] sm:$0xff]
    %v213 = vld [vmem:[#allocation10 + $0x170] sm:$0xff]
    %v214 = vld [vmem:[#allocation10 + $0x178] sm:$0xff]
    %v215 = vld [vmem:[#allocation10 + $0x180] sm:$0xff]
    %v216 = vld [vmem:[#allocation10 + $0x188] sm:$0xff]
    %v217 = vld [vmem:[#allocation10 + $0x190] sm:$0xff]
    %v218 = vld [vmem:[#allocation10 + $0x198] sm:$0xff]
    %v219 = vld [vmem:[#allocation10 + $0x1a0] sm:$0xff]
    %v220 = vld [vmem:[#allocation10 + $0x1a8] sm:$0xff]
    %v221 = vld [vmem:[#allocation10 + $0x1b0] sm:$0xff]
    %v222 = vld [vmem:[#allocation10 + $0x1b8] sm:$0xff]
    %v223 = vld [vmem:[#allocation10 + $0x1c0] sm:$0xff]
    %v224 = vld [vmem:[#allocation10 + $0x1c8] sm:$0xff]
    %v225 = vld [vmem:[#allocation10 + $0x1d0] sm:$0xff]
    %v226 = vld [vmem:[#allocation10 + $0x1d8] sm:$0xff]
    %v227 = vld [vmem:[#allocation10 + $0x1e0] sm:$0xff]
    %v228 = vld [vmem:[#allocation10 + $0x1e8] sm:$0xff]
    %v229 = vld [vmem:[#allocation10 + $0x1f0] sm:$0xff]
    %v230 = vld [vmem:[#allocation10 + $0x1f8] sm:$0xff]
    %v231 = vld [vmem:[%s10] sm:$0xf]
    %v232 = vld [vmem:[#allocation11] sm:$0xff]
    %v233 = vld [vmem:[#allocation11 + $0x8] sm:$0xff]
    %v234 = vld [vmem:[#allocation11 + $0x10] sm:$0xff]
    %v235 = vld [vmem:[#allocation11 + $0x18] sm:$0xff]
    %v236 = vld [vmem:[#allocation11 + $0x20] sm:$0xff]
    %v237 = vld [vmem:[#allocation11 + $0x28] sm:$0xff]
    %v238 = vld [vmem:[#allocation11 + $0x30] sm:$0xff]
    %v239 = vld [vmem:[#allocation11 + $0x38] sm:$0xff]
    %v240 = vld [vmem:[#allocation11 + $0x40] sm:$0xff]
    %v241 = vld [vmem:[#allocation11 + $0x48] sm:$0xff]
    %v242 = vld [vmem:[#allocation11 + $0x50] sm:$0xff]
    %v243 = vld [vmem:[#allocation11 + $0x58] sm:$0xff]
    %v244 = vld [vmem:[#allocation11 + $0x60] sm:$0xff]
    %v245 = vld [vmem:[#allocation11 + $0x68] sm:$0xff]
    %v246 = vld [vmem:[#allocation11 + $0x70] sm:$0xff]
    %v247 = vld [vmem:[#allocation11 + $0x78] sm:$0xff]
    %v248 = vld [vmem:[#allocation11 + $0x80] sm:$0xff]
    %v249 = vld [vmem:[#allocation11 + $0x88] sm:$0xff]
    %v250 = vld [vmem:[#allocation11 + $0x90] sm:$0xff]
    %v251 = vld [vmem:[#allocation11 + $0x98] sm:$0xff]
    %v252 = vld [vmem:[#allocation11 + $0xa0] sm:$0xff]
    %v253 = vld [vmem:[#allocation11 + $0xa8] sm:$0xff]
    %v254 = vld [vmem:[#allocation11 + $0xb0] sm:$0xff]
    %v255 = vld [vmem:[#allocation11 + $0xb8] sm:$0xff]
    %v256 = vld [vmem:[#allocation11 + $0xc0] sm:$0xff]
    %v257 = vld [vmem:[#allocation11 + $0xc8] sm:$0xff]
    %v258 = vld [vmem:[#allocation11 + $0xd0] sm:$0xff]
    %v259 = vld [vmem:[#allocation11 + $0xd8] sm:$0xff]
    %v260 = vld [vmem:[#allocation11 + $0xe0] sm:$0xff]
    %v261 = vld [vmem:[#allocation11 + $0xe8] sm:$0xff]
    %v262 = vld [vmem:[#allocation11 + $0xf0] sm:$0xff]
    %v263 = vld [vmem:[#allocation11 + $0xf8] sm:$0xff]
    %v264 = vld [vmem:[%s12] sm:$0x1]
    %v265 = vmul.f32 %v128, %v131
    %v267 = vlaneseq
    %v268 = vshrl.u32 %v267, 7
    %v269 = vsub.s32 0, %v268
    %v270 = vrot.slane %v132, %v269
    %vm272 = vcmask 64512
    %v274 = vsel %vm272, %v130, 0
    %276 = vmatprep.subr.mxu0 0.0
    %277 = vmatpush1.msra.mxu0 %v265
    %278 = vmatprep.subr.mxu0 0.0
    %279 = vmatpush1.msra.mxu0 0.0
    %280 = vmatprep.subr.mxu0 0.0
    %281 = vmatpush1.msra.mxu0 0.0
    %282 = vmatprep.subr.mxu0 0.0
    %283 = vmatpush1.msra.mxu0 0.0
    %284 = vmatprep.subr.mxu0 0.0
    %285 = vmatpush1.msra.mxu0 0.0
    %286 = vmatprep.subr.mxu0 0.0
    %287 = vmatpush1.msra.mxu0 0.0
    %288 = vmatprep.subr.mxu0 0.0
    %289 = vmatpush1.msra.mxu0 0.0
    %290 = vmatprep.subr.mxu0 0.0
    %291 = vmatpush1.msra.mxu0 0.0
    %292 = vmatprep.subr.mxu0 0.0
    %293 = vmatpush1.msra.mxu0 0.0
    %294 = vmatprep.subr.mxu0 0.0
    %295 = vmatpush1.msra.mxu0 0.0
    %296 = vmatprep.subr.mxu0 0.0
    %297 = vmatpush1.msra.mxu0 0.0
    %298 = vmatprep.subr.mxu0 0.0
    %299 = vmatpush1.msra.mxu0 0.0
    %300 = vmatprep.subr.mxu0 0.0
    %301 = vmatpush1.msra.mxu0 0.0
    %302 = vmatprep.subr.mxu0 0.0
    %303 = vmatpush1.msra.mxu0 0.0
    %304 = vmatprep.subr.mxu0 0.0
    %305 = vmatpush1.msra.mxu0 0.0
    %306 = vmatprep.subr.mxu0 0.0
    %307 = vmatpush1.msra.mxu0 0.0
    %308 = vmatprep.subr.mxu0 0.0
    %309 = vmatpush1.msra.mxu0 0.0
    %310 = vmatprep.subr.mxu0 0.0
    %311 = vmatpush1.msra.mxu0 0.0
    %312 = vmatprep.subr.mxu0 0.0
    %313 = vmatpush1.msra.mxu0 0.0
    %314 = vmatprep.subr.mxu0 0.0
    %315 = vmatpush1.msra.mxu0 0.0
    %316 = vmatprep.subr.mxu0 0.0
    %317 = vmatpush1.msra.mxu0 0.0
    %318 = vmatprep.subr.mxu0 0.0
    %319 = vmatpush1.msra.mxu0 0.0
    %320 = vmatprep.subr.mxu0 0.0
    %321 = vmatpush1.msra.mxu0 0.0
    %322 = vmatprep.subr.mxu0 0.0
    %323 = vmatpush1.msra.mxu0 0.0
    %324 = vmatprep.subr.mxu0 0.0
    %325 = vmatpush1.msra.mxu0 0.0
    %326 = vmatprep.subr.mxu0 0.0
    %327 = vmatpush1.msra.mxu0 0.0
    %328 = vmatprep.subr.mxu0 0.0
    %329 = vmatpush1.msra.mxu0 0.0
    %330 = vmatprep.subr.mxu0 0.0
    %331 = vmatpush1.msra.mxu0 0.0
    %332 = vmatprep.subr.mxu0 0.0
    %333 = vmatpush1.msra.mxu0 0.0
    %334 = vmatprep.subr.mxu0 0.0
    %335 = vmatpush1.msra.mxu0 0.0
    %336 = vmatprep.subr.mxu0 0.0
    %337 = vmatpush1.msra.mxu0 0.0
    %338 = vmatprep.subr.mxu0 0.0
    %339 = vmatpush1.msra.mxu0 0.0
    %340 = vmatprep.mubr.f32.mxu0 0.0
    %341 = vmatmul.mubr.f32.gmra.mrb[0].mxu0 %v274
    %v342 = vpop.f32.mrb[0].mxu0
    %v343 = vadd.f32 %v270, %v342
    %v344 = vpop.f32.mrb[0].mxu0
    %345 = vdwg.mxu0
    %v347 = vlaneseq
    %v348 = vshrl.u32 %v347, 7
    %v349 = vsub.s32 0, %v348
    %v350 = vrot.slane %v149, %v349
    %352 = vmatprep.subr.mxu0 0.0
    %353 = vmatpush1.msra.mxu0 %v133
    %354 = vmatprep.subr.mxu0 0.0
    %355 = vmatpush1.msra.mxu0 %v134
    %356 = vmatprep.subr.mxu0 0.0
    %357 = vmatpush1.msra.mxu0 %v135
    %358 = vmatprep.subr.mxu0 0.0
    %359 = vmatpush1.msra.mxu0 %v136
    %360 = vmatprep.subr.mxu0 0.0
    %361 = vmatpush1.msra.mxu0 %v137
    %362 = vmatprep.subr.mxu0 0.0
    %363 = vmatpush1.msra.mxu0 %v138
    %364 = vmatprep.subr.mxu0 0.0
    %365 = vmatpush1.msra.mxu0 %v139
    %366 = vmatprep.subr.mxu0 0.0
    %367 = vmatpush1.msra.mxu0 %v140
    %368 = vmatprep.subr.mxu0 0.0
    %369 = vmatpush1.msra.mxu0 %v141
    %370 = vmatprep.subr.mxu0 0.0
    %371 = vmatpush1.msra.mxu0 %v142
    %372 = vmatprep.subr.mxu0 0.0
    %373 = vmatpush1.msra.mxu0 %v143
    %374 = vmatprep.subr.mxu0 0.0
    %375 = vmatpush1.msra.mxu0 %v144
    %376 = vmatprep.subr.mxu0 0.0
    %377 = vmatpush1.msra.mxu0 %v145
    %378 = vmatprep.subr.mxu0 0.0
    %379 = vmatpush1.msra.mxu0 %v146
    %380 = vmatprep.subr.mxu0 0.0
    %381 = vmatpush1.msra.mxu0 %v147
    %382 = vmatprep.subr.mxu0 0.0
    %383 = vmatpush1.msra.mxu0 %v148
    %384 = vmatprep.subr.mxu0 0.0
    %385 = vmatpush1.msra.mxu0 0.0
    %386 = vmatprep.subr.mxu0 0.0
    %387 = vmatpush1.msra.mxu0 0.0
    %388 = vmatprep.subr.mxu0 0.0
    %389 = vmatpush1.msra.mxu0 0.0
    %390 = vmatprep.subr.mxu0 0.0
    %391 = vmatpush1.msra.mxu0 0.0
    %392 = vmatprep.subr.mxu0 0.0
    %393 = vmatpush1.msra.mxu0 0.0
    %394 = vmatprep.subr.mxu0 0.0
    %395 = vmatpush1.msra.mxu0 0.0
    %396 = vmatprep.subr.mxu0 0.0
    %397 = vmatpush1.msra.mxu0 0.0
    %398 = vmatprep.subr.mxu0 0.0
    %399 = vmatpush1.msra.mxu0 0.0
    %400 = vmatprep.subr.mxu0 0.0
    %401 = vmatpush1.msra.mxu0 0.0
    %402 = vmatprep.subr.mxu0 0.0
    %403 = vmatpush1.msra.mxu0 0.0
    %404 = vmatprep.subr.mxu0 0.0
    %405 = vmatpush1.msra.mxu0 0.0
    %406 = vmatprep.subr.mxu0 0.0
    %407 = vmatpush1.msra.mxu0 0.0
    %408 = vmatprep.subr.mxu0 0.0
    %409 = vmatpush1.msra.mxu0 0.0
    %410 = vmatprep.subr.mxu0 0.0
    %411 = vmatpush1.msra.mxu0 0.0
    %412 = vmatprep.subr.mxu0 0.0
    %413 = vmatpush1.msra.mxu0 0.0
    %414 = vmatprep.subr.mxu0 0.0
    %415 = vmatpush1.msra.mxu0 0.0
    %416 = vmatprep.mubr.f32.mxu0 0.0
    %417 = vmatmul.mubr.f32.gmra.mrb[0].mxu0 %v129
    %v418 = vpop.f32.mrb[0].mxu0
    %v419 = vadd.f32 %v350, %v418
    %v420 = vpop.f32.mrb[0].mxu0
    %421 = vdwg.mxu0
    %v422 = vmax.f32 %v419, 0.0
    %v424 = vlaneseq
    %v425 = vshrl.u32 %v424, 7
    %v426 = vsub.s32 0, %v425
    %v427 = vrot.slane %v166, %v426
    %429 = vmatprep.subr.mxu0 0.0
    %430 = vmatpush1.msra.mxu0 %v150
    %431 = vmatprep.subr.mxu0 0.0
    %432 = vmatpush1.msra.mxu0 %v151
    %433 = vmatprep.subr.mxu0 0.0
    %434 = vmatpush1.msra.mxu0 %v152
    %435 = vmatprep.subr.mxu0 0.0
    %436 = vmatpush1.msra.mxu0 %v153
    %437 = vmatprep.subr.mxu0 0.0
    %438 = vmatpush1.msra.mxu0 %v154
    %439 = vmatprep.subr.mxu0 0.0
    %440 = vmatpush1.msra.mxu0 %v155
    %441 = vmatprep.subr.mxu0 0.0
    %442 = vmatpush1.msra.mxu0 %v156
    %443 = vmatprep.subr.mxu0 0.0
    %444 = vmatpush1.msra.mxu0 %v157
    %445 = vmatprep.subr.mxu0 0.0
    %446 = vmatpush1.msra.mxu0 %v158
    %447 = vmatprep.subr.mxu0 0.0
    %448 = vmatpush1.msra.mxu0 %v159
    %449 = vmatprep.subr.mxu0 0.0
    %450 = vmatpush1.msra.mxu0 %v160
    %451 = vmatprep.subr.mxu0 0.0
    %452 = vmatpush1.msra.mxu0 %v161
    %453 = vmatprep.subr.mxu0 0.0
    %454 = vmatpush1.msra.mxu0 %v162
    %455 = vmatprep.subr.mxu0 0.0
    %456 = vmatpush1.msra.mxu0 %v163
    %457 = vmatprep.subr.mxu0 0.0
    %458 = vmatpush1.msra.mxu0 %v164
    %459 = vmatprep.subr.mxu0 0.0
    %460 = vmatpush1.msra.mxu0 %v165
    %461 = vmatprep.subr.mxu0 0.0
    %462 = vmatpush1.msra.mxu0 0.0
    %463 = vmatprep.subr.mxu0 0.0
    %464 = vmatpush1.msra.mxu0 0.0
    %465 = vmatprep.subr.mxu0 0.0
    %466 = vmatpush1.msra.mxu0 0.0
    %467 = vmatprep.subr.mxu0 0.0
    %468 = vmatpush1.msra.mxu0 0.0
    %469 = vmatprep.subr.mxu0 0.0
    %470 = vmatpush1.msra.mxu0 0.0
    %471 = vmatprep.subr.mxu0 0.0
    %472 = vmatpush1.msra.mxu0 0.0
    %473 = vmatprep.subr.mxu0 0.0
    %474 = vmatpush1.msra.mxu0 0.0
    %475 = vmatprep.subr.mxu0 0.0
    %476 = vmatpush1.msra.mxu0 0.0
    %477 = vmatprep.subr.mxu0 0.0
    %478 = vmatpush1.msra.mxu0 0.0
    %479 = vmatprep.subr.mxu0 0.0
    %480 = vmatpush1.msra.mxu0 0.0
    %481 = vmatprep.subr.mxu0 0.0
    %482 = vmatpush1.msra.mxu0 0.0
    %483 = vmatprep.subr.mxu0 0.0
    %484 = vmatpush1.msra.mxu0 0.0
    %485 = vmatprep.subr.mxu0 0.0
    %486 = vmatpush1.msra.mxu0 0.0
    %487 = vmatprep.subr.mxu0 0.0
    %488 = vmatpush1.msra.mxu0 0.0
    %489 = vmatprep.subr.mxu0 0.0
    %490 = vmatpush1.msra.mxu0 0.0
    %491 = vmatprep.subr.mxu0 0.0
    %492 = vmatpush1.msra.mxu0 0.0
    %493 = vmatprep.mubr.f32.mxu0 0.0
    %494 = vmatmul.mubr.f32.gmra.mrb[0].mxu0 %v422
    %v495 = vpop.f32.mrb[0].mxu0
    %v496 = vadd.f32 %v427, %v495
    %v497 = vpop.f32.mrb[0].mxu0
    %498 = vdwg.mxu0
    %v499 = vadd.f32 %v496, %v343
    %v501 = vlaneseq
    %v502 = vshrl.u32 %v501, 7
    %v503 = vsub.s32 0, %v502
    %v504 = vrot.slane %v231, %v503
    %v505 = vlaneseq
    %v506 = vshrl.u32 %v505, 7
    %v507 = vsub.s32 1, %v506
    %v508 = vrot.slane %v231, %v507
    %v509 = vlaneseq
    %v510 = vshrl.u32 %v509, 7
    %v511 = vsub.s32 2, %v510
    %v512 = vrot.slane %v231, %v511
    %v513 = vlaneseq
    %v514 = vshrl.u32 %v513, 7
    %v515 = vsub.s32 3, %v514
    %v516 = vrot.slane %v231, %v515
    %521 = vmatprep.subr.mxu0 %v168
    %522 = vmatpush1.msra.mxu0 %v167
    %523 = vmatprep.subr.mxu0 %v172
    %524 = vmatpush1.msra.mxu0 %v171
    %525 = vmatprep.subr.mxu0 %v176
    %526 = vmatpush1.msra.mxu0 %v175
    %527 = vmatprep.subr.mxu0 %v180
    %528 = vmatpush1.msra.mxu0 %v179
    %529 = vmatprep.subr.mxu0 %v184
    %530 = vmatpush1.msra.mxu0 %v183
    %531 = vmatprep.subr.mxu0 %v188
    %532 = vmatpush1.msra.mxu0 %v187
    %533 = vmatprep.subr.mxu0 %v192
    %534 = vmatpush1.msra.mxu0 %v191
    %535 = vmatprep.subr.mxu0 %v196
    %536 = vmatpush1.msra.mxu0 %v195
    %537 = vmatprep.subr.mxu0 %v200
    %538 = vmatpush1.msra.mxu0 %v199
    %539 = vmatprep.subr.mxu0 %v204
    %540 = vmatpush1.msra.mxu0 %v203
    %541 = vmatprep.subr.mxu0 %v208
    %542 = vmatpush1.msra.mxu0 %v207
    %543 = vmatprep.subr.mxu0 %v212
    %544 = vmatpush1.msra.mxu0 %v211
    %545 = vmatprep.subr.mxu0 %v216
    %546 = vmatpush1.msra.mxu0 %v215
    %547 = vmatprep.subr.mxu0 %v220
    %548 = vmatpush1.msra.mxu0 %v219
    %549 = vmatprep.subr.mxu0 %v224
    %550 = vmatpush1.msra.mxu0 %v223
    %551 = vmatprep.subr.mxu0 %v228
    %552 = vmatpush1.msra.mxu0 %v227
    %553 = vmatprep.subr.mxu0 0.0
    %554 = vmatpush1.msra.mxu0 0.0
    %555 = vmatprep.subr.mxu0 0.0
    %556 = vmatpush1.msra.mxu0 0.0
    %557 = vmatprep.subr.mxu0 0.0
    %558 = vmatpush1.msra.mxu0 0.0
    %559 = vmatprep.subr.mxu0 0.0
    %560 = vmatpush1.msra.mxu0 0.0
    %561 = vmatprep.subr.mxu0 0.0
    %562 = vmatpush1.msra.mxu0 0.0
    %563 = vmatprep.subr.mxu0 0.0
    %564 = vmatpush1.msra.mxu0 0.0
    %565 = vmatprep.subr.mxu0 0.0
    %566 = vmatpush1.msra.mxu0 0.0
    %567 = vmatprep.subr.mxu0 0.0
    %568 = vmatpush1.msra.mxu0 0.0
    %569 = vmatprep.subr.mxu0 0.0
    %570 = vmatpush1.msra.mxu0 0.0
    %571 = vmatprep.subr.mxu0 0.0
    %572 = vmatpush1.msra.mxu0 0.0
    %573 = vmatprep.subr.mxu0 0.0
    %574 = vmatpush1.msra.mxu0 0.0
    %575 = vmatprep.subr.mxu0 0.0
    %576 = vmatpush1.msra.mxu0 0.0
    %577 = vmatprep.subr.mxu0 0.0
    %578 = vmatpush1.msra.mxu0 0.0
    %579 = vmatprep.subr.mxu0 0.0
    %580 = vmatpush1.msra.mxu0 0.0
    %581 = vmatprep.subr.mxu0 0.0
    %582 = vmatpush1.msra.mxu0 0.0
    %583 = vmatprep.subr.mxu0 0.0
    %584 = vmatpush1.msra.mxu0 0.0
    %585 = vmatprep.mubr.f32.mxu0 0.0
    %586 = vmatmul.mubr.f32.gmra.mrb[0].mxu0 %v499
    %v587 = vpop.f32.mrb[0].mxu0
    %v588 = vadd.f32 %v504, %v587
    %v589 = vpop.f32.mrb[0].mxu0
    %v590 = vadd.f32 %v508, %v589
    %591 = vdwg.mxu0
    %592 = vmatprep.subr.mxu0 %v170
    %593 = vmatpush1.msra.mxu0 %v169
    %594 = vmatprep.subr.mxu0 %v174
    %595 = vmatpush1.msra.mxu0 %v173
    %596 = vmatprep.subr.mxu0 %v178
    %597 = vmatpush1.msra.mxu0 %v177
    %598 = vmatprep.subr.mxu0 %v182
    %599 = vmatpush1.msra.mxu0 %v181
    %600 = vmatprep.subr.mxu0 %v186
    %601 = vmatpush1.msra.mxu0 %v185
    %602 = vmatprep.subr.mxu0 %v190
    %603 = vmatpush1.msra.mxu0 %v189
    %604 = vmatprep.subr.mxu0 %v194
    %605 = vmatpush1.msra.mxu0 %v193
    %606 = vmatprep.subr.mxu0 %v198
    %607 = vmatpush1.msra.mxu0 %v197
    %608 = vmatprep.subr.mxu0 %v202
    %609 = vmatpush1.msra.mxu0 %v201
    %610 = vmatprep.subr.mxu0 %v206
    %611 = vmatpush1.msra.mxu0 %v205
    %612 = vmatprep.subr.mxu0 %v210
    %613 = vmatpush1.msra.mxu0 %v209
    %614 = vmatprep.subr.mxu0 %v214
    %615 = vmatpush1.msra.mxu0 %v213
    %616 = vmatprep.subr.mxu0 %v218
    %617 = vmatpush1.msra.mxu0 %v217
    %618 = vmatprep.subr.mxu0 %v222
    %619 = vmatpush1.msra.mxu0 %v221
    %620 = vmatprep.subr.mxu0 %v226
    %621 = vmatpush1.msra.mxu0 %v225
    %622 = vmatprep.subr.mxu0 %v230
    %623 = vmatpush1.msra.mxu0 %v229
    %624 = vmatprep.subr.mxu0 0.0
    %625 = vmatpush1.msra.mxu0 0.0
    %626 = vmatprep.subr.mxu0 0.0
    %627 = vmatpush1.msra.mxu0 0.0
    %628 = vmatprep.subr.mxu0 0.0
    %629 = vmatpush1.msra.mxu0 0.0
    %630 = vmatprep.subr.mxu0 0.0
    %631 = vmatpush1.msra.mxu0 0.0
    %632 = vmatprep.subr.mxu0 0.0
    %633 = vmatpush1.msra.mxu0 0.0
    %634 = vmatprep.subr.mxu0 0.0
    %635 = vmatpush1.msra.mxu0 0.0
    %636 = vmatprep.subr.mxu0 0.0
    %637 = vmatpush1.msra.mxu0 0.0
    %638 = vmatprep.subr.mxu0 0.0
    %639 = vmatpush1.msra.mxu0 0.0
    %640 = vmatprep.subr.mxu0 0.0
    %641 = vmatpush1.msra.mxu0 0.0
    %642 = vmatprep.subr.mxu0 0.0
    %643 = vmatpush1.msra.mxu0 0.0
    %644 = vmatprep.subr.mxu0 0.0
    %645 = vmatpush1.msra.mxu0 0.0
    %646 = vmatprep.subr.mxu0 0.0
    %647 = vmatpush1.msra.mxu0 0.0
    %648 = vmatprep.subr.mxu0 0.0
    %649 = vmatpush1.msra.mxu0 0.0
    %650 = vmatprep.subr.mxu0 0.0
    %651 = vmatpush1.msra.mxu0 0.0
    %652 = vmatprep.subr.mxu0 0.0
    %653 = vmatpush1.msra.mxu0 0.0
    %654 = vmatprep.subr.mxu0 0.0
    %655 = vmatpush1.msra.mxu0 0.0
    %656 = vmatprep.mubr.f32.mxu0 0.0
    %657 = vmatmul.mubr.f32.gmra.mrb[0].mxu0 %v499
    %v658 = vpop.f32.mrb[0].mxu0
    %v659 = vadd.f32 %v512, %v658
    %v660 = vpop.f32.mrb[0].mxu0
    %v661 = vadd.f32 %v516, %v660
    %662 = vdwg.mxu0
    %v663 = vmax.f32 %v659, 0.0
    %v664 = vmax.f32 %v661, 0.0
    %v665 = vadd.f32 %v663, %v588
    %v666 = vadd.f32 %v664, %v590
    %v668 = vlaneseq
    %v669 = vshrl.u32 %v668, 7
    %v670 = vsub.s32 0, %v669
    %v671 = vrot.slane %v264, %v670
    %673 = vmatprep.subr.mxu0 0.0
    %674 = vmatpush1.msra.mxu0 %v232
    %675 = vmatprep.subr.mxu0 0.0
    %676 = vmatpush1.msra.mxu0 %v233
    %677 = vmatprep.subr.mxu0 0.0
    %678 = vmatpush1.msra.mxu0 %v234
    %679 = vmatprep.subr.mxu0 0.0
    %680 = vmatpush1.msra.mxu0 %v235
    %681 = vmatprep.subr.mxu0 0.0
    %682 = vmatpush1.msra.mxu0 %v236
    %683 = vmatprep.subr.mxu0 0.0
    %684 = vmatpush1.msra.mxu0 %v237
    %685 = vmatprep.subr.mxu0 0.0
    %686 = vmatpush1.msra.mxu0 %v238
    %687 = vmatprep.subr.mxu0 0.0
    %688 = vmatpush1.msra.mxu0 %v239
    %689 = vmatprep.subr.mxu0 0.0
    %690 = vmatpush1.msra.mxu0 %v240
    %691 = vmatprep.subr.mxu0 0.0
    %692 = vmatpush1.msra.mxu0 %v241
    %693 = vmatprep.subr.mxu0 0.0
    %694 = vmatpush1.msra.mxu0 %v242
    %695 = vmatprep.subr.mxu0 0.0
    %696 = vmatpush1.msra.mxu0 %v243
    %697 = vmatprep.subr.mxu0 0.0
    %698 = vmatpush1.msra.mxu0 %v244
    %699 = vmatprep.subr.mxu0 0.0
    %700 = vmatpush1.msra.mxu0 %v245
    %701 = vmatprep.subr.mxu0 0.0
    %702 = vmatpush1.msra.mxu0 %v246
    %703 = vmatprep.subr.mxu0 0.0
    %704 = vmatpush1.msra.mxu0 %v247
    %705 = vmatprep.subr.mxu0 0.0
    %706 = vmatpush1.msra.mxu0 %v248
    %707 = vmatprep.subr.mxu0 0.0
    %708 = vmatpush1.msra.mxu0 %v249
    %709 = vmatprep.subr.mxu0 0.0
    %710 = vmatpush1.msra.mxu0 %v250
    %711 = vmatprep.subr.mxu0 0.0
    %712 = vmatpush1.msra.mxu0 %v251
    %713 = vmatprep.subr.mxu0 0.0
    %714 = vmatpush1.msra.mxu0 %v252
    %715 = vmatprep.subr.mxu0 0.0
    %716 = vmatpush1.msra.mxu0 %v253
    %717 = vmatprep.subr.mxu0 0.0
    %718 = vmatpush1.msra.mxu0 %v254
    %719 = vmatprep.subr.mxu0 0.0
    %720 = vmatpush1.msra.mxu0 %v255
    %721 = vmatprep.subr.mxu0 0.0
    %722 = vmatpush1.msra.mxu0 %v256
    %723 = vmatprep.subr.mxu0 0.0
    %724 = vmatpush1.msra.mxu0 %v257
    %725 = vmatprep.subr.mxu0 0.0
    %726 = vmatpush1.msra.mxu0 %v258
    %727 = vmatprep.subr.mxu0 0.0
    %728 = vmatpush1.msra.mxu0 %v259
    %729 = vmatprep.subr.mxu0 0.0
    %730 = vmatpush1.msra.mxu0 %v260
    %731 = vmatprep.subr.mxu0 0.0
    %732 = vmatpush1.msra.mxu0 %v261
    %733 = vmatprep.subr.mxu0 0.0
    %734 = vmatpush1.msra.mxu0 %v262
    %735 = vmatprep.subr.mxu0 0.0
    %736 = vmatpush1.msra.mxu0 %v263
    %737 = vmatprep.mubr.f32.mxu0 %v666
    %738 = vmatmul.mubr.f32.gmra.mrb[0].mxu0 %v665
    %v739 = vpop.f32.mrb[0].mxu0
    %v740 = vadd.f32 %v671, %v739
    %v741 = vpop.f32.mrb[0].mxu0
    %742 = vdwg.mxu0
    %743 = vst [vmem:[#allocation13] sm:$0x3] %v740
    // Predicated region
    $region78: #{tpu_custom_call.1} parent=1 // pred_check
      _
    $region79: #{tpu_custom_call.1} parent=1 // pred_check_branch
      %745 = sbr.rel (0) target = $region81
    $region80: #{tpu_custom_call.1} parent=1 // pred_region
      %s747 = ssub.s32 32, 32
      %748 = vsyncadd [#allocation4], %s747
      %s750 = sshll.u32 [#allocation13], 4
      %s751 = int_to_ptr.vmem [resolvable:$true] %s750
      %753 = dma.vmem_to_hbm [thread:$0]  %s751, 32, %s13, [#allocation4]
    $region81: #{tpu_custom_call.1} parent=1 // pred_fallthru
      _
    // Predicated region
    $region82: #{tpu_custom_call.1} parent=1 // pred_check
      _
    $region83: #{tpu_custom_call.1} parent=1 // pred_check_branch
      %755 = sbr.rel (0) target = $region85
    $region84: #{tpu_custom_call.1} parent=1 // pred_region
      %756 = dma.done [#allocation4], 32
    $region85: #{tpu_custom_call.1} parent=1 // pred_fallthru
      _
    %757 = vsyncpa [#allocation3], 1
    %758 = vsyncpa [#allocation6], 1
    %759 = vsyncpa [#allocation9], 1
    %760 = vsyncpa [#allocation12], 1
    %761 = vsyncpa [#allocation4], 1

</llo_original>
